<compile_context>
chip_gen: v7x
topology: tpu7x:2x2x1
jax: 0.10.0
libtpu: 0.0.40
codegen_flags: <defaults>
</compile_context>

<pallas_src>
import jax
import jax.numpy as jnp
from jax.experimental import pallas as pl
from jax.experimental.pallas import tpu as pltpu


NUM_GROUPS = 32
EPS = 1e-5


def projection_kernel(x_ref, wt_ref, b_ref, gamma_ref, beta_ref, gmask_ref, o_ref):
    # x_ref:        (1, HW, C_in)   one sample, channels-last (C on the lane axis)
    # wt_ref:       (C_in, C_out)   1x1-conv weight, pre-transposed
    # b/gamma/beta: (1, C_out)
    # gmask_ref:    (C_out, C_out)  block-diagonal 1s for "same GroupNorm group"
    x = x_ref[0]                                                     # [HW, C_in]

    # 1x1 conv == per-pixel channel projection on the MXU (f32 accumulation).
    y = jnp.dot(x, wt_ref[...], preferred_element_type=jnp.float32)
    y = y + b_ref[...]                                               # [HW, C_out]

    hw, c_out = y.shape
    cg = c_out // NUM_GROUPS
    inv_denom = 1.0 / float(hw * cg)

    # GroupNorm stats:
    #   spatial reduce over HW (sublane axis) -> per-channel sums,
    #   then a tiny [1,C] @ [C,C] block-diagonal matmul broadcasts the per-group
    #   sum back onto every channel of its group (avoids cross-lane reshapes).
    ch_sum = jnp.sum(y, axis=0, keepdims=True)                       # [1, C_out]
    mean = jnp.dot(ch_sum, gmask_ref[...],
                   preferred_element_type=jnp.float32) * inv_denom   # [1, C_out]

    d = y - mean                                                     # reused for output
    ch_ss = jnp.sum(d * d, axis=0, keepdims=True)                    # [1, C_out]
    var = jnp.dot(ch_ss, gmask_ref[...],
                  preferred_element_type=jnp.float32) * inv_denom    # [1, C_out]
    inv_std = jax.lax.rsqrt(var + EPS)

    scale = inv_std * gamma_ref[...]                                 # [1, C_out]
    out = d * scale + beta_ref[...]
    o_ref[0] = jnp.maximum(out, 0.0).astype(o_ref.dtype)


def projection_forward(x_nchw, w, b, gamma, beta):
    """x: [N, C_in, H, W]; w: [C_out, C_in] or [C_out, C_in, 1, 1]; b/gamma/beta: [C_out]."""
    n, c_in, h, w_sp = x_nchw.shape
    if w.ndim == 4:                       # accept the raw Conv2d weight layout too
        w = w.reshape(w.shape[0], w.shape[1])
    c_out = w.shape[0]
    hw = h * w_sp
    assert c_out % NUM_GROUPS == 0, "GroupNorm(32) needs out_channels % 32 == 0"

    # NCHW -> (N, HW, C_in): channel dim last (lane dim). Layout plumbing outside
    # the kernel, handled by XLA.
    x = jnp.transpose(x_nchw, (0, 2, 3, 1)).reshape(n, hw, c_in)
    wt = jnp.transpose(w)                                            # [C_in, C_out]
    b2 = b.reshape(1, c_out)
    g2 = gamma.reshape(1, c_out)
    be2 = beta.reshape(1, c_out)

    cg = c_out // NUM_GROUPS
    gid = jnp.arange(c_out) // cg
    gmask = (gid[:, None] == gid[None, :]).astype(jnp.float32)       # [C_out, C_out]

    flops = (2 * n * hw * c_in * c_out            # conv matmul
             + 2 * 2 * n * c_out * c_out          # two tiny group-reduce matmuls
             + 8 * n * hw * c_out)                # elementwise epilogue
    bytes_accessed = 4 * (x.size + wt.size + 4 * c_out + gmask.size + n * hw * c_out)

    out = pl.pallas_call(
        projection_kernel,
        out_shape=jax.ShapeDtypeStruct((n, hw, c_out), x.dtype),
        grid=(n,),
        in_specs=[
            pl.BlockSpec((1, hw, c_in), lambda i: (i, 0, 0)),        # streamed per sample
            pl.BlockSpec((c_in, c_out), lambda i: (0, 0)),           # resident weights
            pl.BlockSpec((1, c_out), lambda i: (0, 0)),
            pl.BlockSpec((1, c_out), lambda i: (0, 0)),
            pl.BlockSpec((1, c_out), lambda i: (0, 0)),
            pl.BlockSpec((c_out, c_out), lambda i: (0, 0)),
        ],
        out_specs=pl.BlockSpec((1, hw, c_out), lambda i: (i, 0, 0)),
        compiler_params=pltpu.CompilerParams(
            dimension_semantics=("parallel",)),
        cost_estimate=pl.CostEstimate(
            flops=flops, transcendentals=n * c_out,
            bytes_accessed=bytes_accessed),
    )(x, wt, b2, g2, be2, gmask)

    # (N, HW, C_out) -> NCHW to match the PyTorch module's output layout.
    return jnp.transpose(out.reshape(n, h, w_sp, c_out), (0, 3, 1, 2))


if __name__ == "__main__":
    # Small shapes consistent with the module; out_channels must be a multiple of
    # 32 for GroupNorm(32, .) and is chosen as 128 to be lane-dense.
    batch, in_channels, out_channels, H, W = 2, 128, 128, 16, 16

    key = jax.random.PRNGKey(0)
    kx, kw, kb, kg, kbe = jax.random.split(key, 5)

    x = jax.random.normal(kx, (batch, in_channels, H, W), jnp.float32)
    w = jax.random.normal(kw, (out_channels, in_channels), jnp.float32) / jnp.sqrt(in_channels)
    b = 0.1 * jax.random.normal(kb, (out_channels,), jnp.float32)
    gamma = 1.0 + 0.1 * jax.random.normal(kg, (out_channels,), jnp.float32)
    beta = 0.1 * jax.random.normal(kbe, (out_channels,), jnp.float32)

    out = projection_forward(x, w, b, gamma, beta)
    jax.block_until_ready(out)

    # Reference in plain JAX (same math as Conv2d(k=1) + GroupNorm(32) + ReLU).
    y = jnp.einsum('nchw,oc->nohw', x, w,
                   precision=jax.lax.Precision.HIGHEST) + b[None, :, None, None]
    G = NUM_GROUPS
    yg = y.reshape(batch, G, out_channels // G, H, W)
    mean = yg.mean(axis=(2, 3, 4), keepdims=True)
    var = ((yg - mean) ** 2).mean(axis=(2, 3, 4), keepdims=True)
    yn = ((yg - mean) / jnp.sqrt(var + EPS)).reshape(batch, out_channels, H, W)
    ref = jnp.maximum(yn * gamma[None, :, None, None] + beta[None, :, None, None], 0.0)

    assert out.shape == ref.shape
    max_err = float(jnp.max(jnp.abs(out - ref)))
    # Tolerance leaves headroom for the MXU's f32-operand handling (possible
    # reduced-precision passes); a real GroupNorm/conv bug would be O(0.1+).
    assert jnp.allclose(out, ref, atol=1e-2, rtol=1e-2), max_err

    print("KERNEL_OK")
</pallas_src>

<mosaic_0001>
module attributes {stable_mosaic.version = 11 : i64} {
  func.func @projection_kernel(%arg0: i32, %arg1: memref<1x256x128xf32, #tpu.memory_space<vmem>>, %arg2: memref<128x128xf32, #tpu.memory_space<vmem>>, %arg3: memref<1x128xf32, #tpu.memory_space<vmem>>, %arg4: memref<1x128xf32, #tpu.memory_space<vmem>>, %arg5: memref<1x128xf32, #tpu.memory_space<vmem>>, %arg6: memref<128x128xf32, #tpu.memory_space<vmem>>, %arg7: memref<1x256x128xf32, #tpu.memory_space<vmem>>) attributes {dimension_semantics = [#tpu.dimension_semantics<parallel>], iteration_bounds = array<i64: 2>, scalar_prefetch = 0 : i64, scratch_operands = 0 : i64, tpu.core_type = #tpu.core_type<tc>, window_params = [{transform_indices = @transform_0, window_bounds = array<i64: 1, 256, 128>}, {pipeline_mode = #tpu.pipeline_mode<synchronous>, transform_indices = @transform_1, window_bounds = array<i64: 128, 128>}, {pipeline_mode = #tpu.pipeline_mode<synchronous>, transform_indices = @transform_2, window_bounds = array<i64: 1, 128>}, {pipeline_mode = #tpu.pipeline_mode<synchronous>, transform_indices = @transform_3, window_bounds = array<i64: 1, 128>}, {pipeline_mode = #tpu.pipeline_mode<synchronous>, transform_indices = @transform_4, window_bounds = array<i64: 1, 128>}, {pipeline_mode = #tpu.pipeline_mode<synchronous>, transform_indices = @transform_5, window_bounds = array<i64: 128, 128>}, {transform_indices = @transform_6, window_bounds = array<i64: 1, 256, 128>}]} {
    %c0 = arith.constant 0 : index
    %c0_0 = arith.constant 0 : index
    %c0_1 = arith.constant 0 : index
    %0 = vector.load %arg1[%c0, %c0_0, %c0_1] : memref<1x256x128xf32, #tpu.memory_space<vmem>>, vector<1x256x128xf32>
    %1 = vector.shape_cast %0 : vector<1x256x128xf32> to vector<256x128xf32>
    %c0_2 = arith.constant 0 : index
    %c0_3 = arith.constant 0 : index
    %2 = vector.load %arg2[%c0_2, %c0_3] : memref<128x128xf32, #tpu.memory_space<vmem>>, vector<128x128xf32>
    %cst = arith.constant dense<0.000000e+00> : vector<256x128xf32>
    %3 = tpu.matmul %1, %2, %cst {dimension_numbers = #tpu.dot_dimension_numbers<[1], [0], [0], [1], [0, 0, 1, 1], [], []>} : vector<256x128xf32>, vector<128x128xf32>, vector<256x128xf32> -> vector<256x128xf32>
    %c0_4 = arith.constant 0 : index
    %c0_5 = arith.constant 0 : index
    %4 = vector.load %arg3[%c0_4, %c0_5] : memref<1x128xf32, #tpu.memory_space<vmem>>, vector<1x128xf32>
    %5 = vector.broadcast %4 : vector<1x128xf32> to vector<256x128xf32>
    %6 = arith.addf %3, %5 : vector<256x128xf32>
    %cst_6 = arith.constant dense<0.000000e+00> : vector<128xf32>
    %7 = vector.multi_reduction <add>, %6, %cst_6 [0] : vector<256x128xf32> to vector<128xf32>
    %8 = vector.shape_cast %7 : vector<128xf32> to vector<1x128xf32>
    %c0_7 = arith.constant 0 : index
    %c0_8 = arith.constant 0 : index
    %9 = vector.load %arg6[%c0_7, %c0_8] : memref<128x128xf32, #tpu.memory_space<vmem>>, vector<128x128xf32>
    %cst_9 = arith.constant dense<0.000000e+00> : vector<1x128xf32>
    %10 = tpu.matmul %8, %9, %cst_9 {dimension_numbers = #tpu.dot_dimension_numbers<[1], [0], [0], [1], [0, 0, 1, 1], [], []>} : vector<1x128xf32>, vector<128x128xf32>, vector<1x128xf32> -> vector<1x128xf32>
    %cst_10 = arith.constant 9.765625E-4 : f32
    %11 = vector.broadcast %cst_10 : f32 to vector<1x128xf32>
    %12 = arith.mulf %10, %11 : vector<1x128xf32>
    %13 = vector.broadcast %12 : vector<1x128xf32> to vector<256x128xf32>
    %14 = arith.subf %6, %13 : vector<256x128xf32>
    %15 = arith.mulf %14, %14 : vector<256x128xf32>
    %cst_11 = arith.constant dense<0.000000e+00> : vector<128xf32>
    %16 = vector.multi_reduction <add>, %15, %cst_11 [0] : vector<256x128xf32> to vector<128xf32>
    %17 = vector.shape_cast %16 : vector<128xf32> to vector<1x128xf32>
    %c0_12 = arith.constant 0 : index
    %c0_13 = arith.constant 0 : index
    %18 = vector.load %arg6[%c0_12, %c0_13] : memref<128x128xf32, #tpu.memory_space<vmem>>, vector<128x128xf32>
    %cst_14 = arith.constant dense<0.000000e+00> : vector<1x128xf32>
    %19 = tpu.matmul %17, %18, %cst_14 {dimension_numbers = #tpu.dot_dimension_numbers<[1], [0], [0], [1], [0, 0, 1, 1], [], []>} : vector<1x128xf32>, vector<128x128xf32>, vector<1x128xf32> -> vector<1x128xf32>
    %cst_15 = arith.constant 9.765625E-4 : f32
    %20 = vector.broadcast %cst_15 : f32 to vector<1x128xf32>
    %21 = arith.mulf %19, %20 : vector<1x128xf32>
    %cst_16 = arith.constant 9.99999974E-6 : f32
    %22 = vector.broadcast %cst_16 : f32 to vector<1x128xf32>
    %23 = arith.addf %21, %22 : vector<1x128xf32>
    %24 = math.rsqrt %23 : vector<1x128xf32>
    %c0_17 = arith.constant 0 : index
    %c0_18 = arith.constant 0 : index
    %25 = vector.load %arg4[%c0_17, %c0_18] : memref<1x128xf32, #tpu.memory_space<vmem>>, vector<1x128xf32>
    %26 = arith.mulf %24, %25 : vector<1x128xf32>
    %27 = vector.broadcast %26 : vector<1x128xf32> to vector<256x128xf32>
    %28 = arith.mulf %14, %27 : vector<256x128xf32>
    %c0_19 = arith.constant 0 : index
    %c0_20 = arith.constant 0 : index
    %29 = vector.load %arg5[%c0_19, %c0_20] : memref<1x128xf32, #tpu.memory_space<vmem>>, vector<1x128xf32>
    %30 = vector.broadcast %29 : vector<1x128xf32> to vector<256x128xf32>
    %31 = arith.addf %28, %30 : vector<256x128xf32>
    %cst_21 = arith.constant 0.000000e+00 : f32
    %32 = vector.broadcast %cst_21 : f32 to vector<256x128xf32>
    %33 = arith.maximumf %31, %32 : vector<256x128xf32>
    %c0_22 = arith.constant 0 : index
    %c0_23 = arith.constant 0 : index
    %c0_24 = arith.constant 0 : index
    %34 = vector.load %arg7[%c0_22, %c0_23, %c0_24] : memref<1x256x128xf32, #tpu.memory_space<vmem>>, vector<1x256x128xf32>
    %35 = vector.shape_cast %34 : vector<1x256x128xf32> to vector<256x128xf32>
    %36 = vector.shape_cast %33 : vector<256x128xf32> to vector<1x256x128xf32>
    tpu.vector_store %arg7[%c0_22, %c0_23, %c0_24], %36 {strides = array<i32>} : memref<1x256x128xf32, #tpu.memory_space<vmem>>, vector<1x256x128xf32>,
    return
  }
  func.func @transform_0(%arg0: i32) -> (i32, i32, i32) {
    %c0_i32 = arith.constant 0 : i32
    %c0_i32_0 = arith.constant 0 : i32
    %c0_i32_1 = arith.constant 0 : i32
    return %arg0, %c0_i32, %c0_i32_0 : i32, i32, i32
  }
  func.func @transform_1(%arg0: i32) -> (i32, i32) {
    %c0_i32 = arith.constant 0 : i32
    %c0_i32_0 = arith.constant 0 : i32
    %c0_i32_1 = arith.constant 0 : i32
    return %c0_i32, %c0_i32_0 : i32, i32
  }
  func.func @transform_2(%arg0: i32) -> (i32, i32) {
    %c0_i32 = arith.constant 0 : i32
    %c0_i32_0 = arith.constant 0 : i32
    %c0_i32_1 = arith.constant 0 : i32
    return %c0_i32, %c0_i32_0 : i32, i32
  }
  func.func @transform_3(%arg0: i32) -> (i32, i32) {
    %c0_i32 = arith.constant 0 : i32
    %c0_i32_0 = arith.constant 0 : i32
    %c0_i32_1 = arith.constant 0 : i32
    return %c0_i32, %c0_i32_0 : i32, i32
  }
  func.func @transform_4(%arg0: i32) -> (i32, i32) {
    %c0_i32 = arith.constant 0 : i32
    %c0_i32_0 = arith.constant 0 : i32
    %c0_i32_1 = arith.constant 0 : i32
    return %c0_i32, %c0_i32_0 : i32, i32
  }
  func.func @transform_5(%arg0: i32) -> (i32, i32) {
    %c0_i32 = arith.constant 0 : i32
    %c0_i32_0 = arith.constant 0 : i32
    %c0_i32_1 = arith.constant 0 : i32
    return %c0_i32, %c0_i32_0 : i32, i32
  }
  func.func @transform_6(%arg0: i32) -> (i32, i32, i32) {
    %c0_i32 = arith.constant 0 : i32
    %c0_i32_0 = arith.constant 0 : i32
    %c0_i32_1 = arith.constant 0 : i32
    return %arg0, %c0_i32, %c0_i32_0 : i32, i32, i32
  }
}

</mosaic_0001>

<llo_original>
// kernel: tpu_custom_call.1
$region0: #{tpu_custom_call.1}
  #allocation0 [shape = 'u32[]', space=smem, size = 0x4, offset = 0x4, fixed_abs, tag = 'smem constant byte address 0x4 - core index']
  #allocation1 [shape = 'u32[144,128]{1,0:T(1,128)}', space=vmem, size = 0x12000, scoped, tag = 'internal scratch']
  %s0 = inlined_call_operand.hbm [shape: f32[2,256,128], index: 0, kind: input, shape index: {}]
  %s1 = inlined_call_operand.hbm [shape: f32[128,128], index: 1, kind: input, shape index: {}]
  %s2 = inlined_call_operand.vmem [shape: f32[1,128], index: 2, kind: input, shape index: {}]
  %s3 = inlined_call_operand.vmem [shape: f32[1,128], index: 3, kind: input, shape index: {}]
  %s4 = inlined_call_operand.vmem [shape: f32[1,128], index: 4, kind: input, shape index: {}]
  %s5 = inlined_call_operand.hbm [shape: f32[128,128], index: 5, kind: input, shape index: {}]
  %s6 = inlined_call_operand.hbm [shape: f32[2,256,128], index: 6, kind: output, shape index: {}]
  %s7 = sld [smem:[#allocation0]]
  $region69: #{tpu_custom_call.1} parent=0
    _
  %s9 = ssub.s32 1, %s7
  %s10 = scalar_select 0, %s9, %s7
  $region1: #{tpu_custom_call.1} parent=0
    #allocation2 [shape = 'u8[262144]{0}', space=vmem, size = 0x40000, scoped, tag = 'input window, operand 0']
    #allocation3 [shape = 's32[2]{0}', space=sflag, size = 0x8, scoped, tag = 'scoped memory for tpu_custom_call.1']
    #allocation4 [shape = 's32[2]{0}', space=sflag, size = 0x8, scoped, tag = 'scoped memory for tpu_custom_call.1']
    #allocation5 [shape = 'u8[65536]{0}', space=vmem, size = 0x10000, scoped, tag = 'input window, operand 1, single buffered']
    #allocation6 [shape = 's32[1]{0}', space=sflag, size = 0x4, scoped, tag = 'scoped memory for tpu_custom_call.1']
    #allocation7 [shape = 'u8[65536]{0}', space=vmem, size = 0x10000, scoped, tag = 'input window, operand 5, single buffered']
    #allocation8 [shape = 'u8[262144]{0}', space=vmem, size = 0x40000, scoped, tag = 'output window, operand 0']
    %11 = vsyncpa [#allocation3], 0
    %s12 = scalar_lea.sflag [#allocation3], 1
    %13 = vsyncpa %s12, 0
    %14 = vsyncpa [#allocation6], 0
    %15 = vsyncpa [#allocation4], 0
    %s16 = scalar_lea.sflag [#allocation4], 1
    %17 = vsyncpa %s16, 0
    loop: start=0, step=1, limit=4
    $region2: #{tpu_custom_call.1} parent=1 // loop_pre_header
      _
    $region3: #{tpu_custom_call.1} parent=1 // loop_header
      %s19 = sphi 0, %s23
      %p20 = scmp.ge.s32.totalorder %s19, 4
      %s29 = sphi 0, %s31
      %s32 = sphi 0, %s29
      %s33 = sphi 0, %s32
      %s49 = sphi 0, %s33
      %s53 = sphi 0, %s53
      %s55 = sphi 0, %s53
      %s56 = sphi 0, %s55
      %s70 = sphi 0, %s56
      %s74 = sphi 0, %s74
      %s76 = sphi 0, %s74
      %s77 = sphi 0, %s76
      %s91 = sphi 0, %s77
      %s95 = sphi 0, %s95
      %s97 = sphi 0, %s95
      %s98 = sphi 0, %s97
      %s112 = sphi 0, %s98
      %s116 = sphi 0, %s116
      %s118 = sphi 0, %s116
      %s119 = sphi 0, %s118
      %s133 = sphi 0, %s119
      %s137 = sphi 0, %s137
      %s139 = sphi 0, %s137
      %s140 = sphi 0, %s139
      %s154 = sphi 0, %s140
      %s160 = sphi 0, %s162
      %s163 = sphi 0, %s160
      %s164 = sphi 0, %s163
      %s180 = sphi 0, %s164
    $region4: #{tpu_custom_call.1} parent=1 // loop_header_branch
      %22 = sbr.rel (%p20) target = $region8
    $region5: #{tpu_custom_call.1} parent=1 // loop_body
      %s24 = ssub.s32 %s19, 1
      %s25 = ssub.s32 %s19, 2
      %s26 = sadd.s32 %s19, 1
      %s27 = ssub.s32 %s19, %s26
      %p28 = scmp.eq.s32.totalorder %s27, 0
      %s30 = sadd.s32 %s29, 1
      %s31 = scalar_select %p28, %s29, %s30
      %p34 = pneg %p28
      %p35 = scmp.eq.s32.totalorder %s19, 1
      %p36 = por %p34, %p35
      %p37 = scmp.ne.s32.totalorder %s29, %s32
      %p38 = scmp.eq.s32.totalorder %s19, 0
      %p39 = por %p37, %p38
      %p40 = scmp.ne.s32.totalorder %s29, %s32
      %p41 = scmp.eq.s32.totalorder %s24, 1
      %p42 = por %p40, %p41
      %p43 = scmp.ne.s32.totalorder %s32, %s33
      %p44 = scmp.eq.s32.totalorder %s24, 0
      %p45 = por %p43, %p44
      %p46 = scmp.ne.s32.totalorder %s32, %s33
      %p47 = scmp.eq.s32.totalorder %s25, 1
      %p48 = por %p46, %p47
      %p50 = scmp.ne.s32.totalorder %s33, %s49
      %p51 = scmp.eq.s32.totalorder %s25, 0
      %p52 = por %p50, %p51
      %s54 = sadd.s32 %s53, 1
      %p57 = scmp.eq.s32.totalorder %s19, 1
      %p58 = scmp.ne.s32.totalorder %s53, %s55
      %p59 = scmp.eq.s32.totalorder %s19, 0
      %p60 = por %p58, %p59
      %p61 = scmp.ne.s32.totalorder %s53, %s55
      %p62 = scmp.eq.s32.totalorder %s24, 1
      %p63 = por %p61, %p62
      %p64 = scmp.ne.s32.totalorder %s55, %s56
      %p65 = scmp.eq.s32.totalorder %s24, 0
      %p66 = por %p64, %p65
      %p67 = scmp.ne.s32.totalorder %s55, %s56
      %p68 = scmp.eq.s32.totalorder %s25, 1
      %p69 = por %p67, %p68
      %p71 = scmp.ne.s32.totalorder %s56, %s70
      %p72 = scmp.eq.s32.totalorder %s25, 0
      %p73 = por %p71, %p72
      %s75 = sadd.s32 %s74, 1
      %p78 = scmp.eq.s32.totalorder %s19, 1
      %p79 = scmp.ne.s32.totalorder %s74, %s76
      %p80 = scmp.eq.s32.totalorder %s19, 0
      %p81 = por %p79, %p80
      %p82 = scmp.ne.s32.totalorder %s74, %s76
      %p83 = scmp.eq.s32.totalorder %s24, 1
      %p84 = por %p82, %p83
      %p85 = scmp.ne.s32.totalorder %s76, %s77
      %p86 = scmp.eq.s32.totalorder %s24, 0
      %p87 = por %p85, %p86
      %p88 = scmp.ne.s32.totalorder %s76, %s77
      %p89 = scmp.eq.s32.totalorder %s25, 1
      %p90 = por %p88, %p89
      %p92 = scmp.ne.s32.totalorder %s77, %s91
      %p93 = scmp.eq.s32.totalorder %s25, 0
      %p94 = por %p92, %p93
      %s96 = sadd.s32 %s95, 1
      %p99 = scmp.eq.s32.totalorder %s19, 1
      %p100 = scmp.ne.s32.totalorder %s95, %s97
      %p101 = scmp.eq.s32.totalorder %s19, 0
      %p102 = por %p100, %p101
      %p103 = scmp.ne.s32.totalorder %s95, %s97
      %p104 = scmp.eq.s32.totalorder %s24, 1
      %p105 = por %p103, %p104
      %p106 = scmp.ne.s32.totalorder %s97, %s98
      %p107 = scmp.eq.s32.totalorder %s24, 0
      %p108 = por %p106, %p107
      %p109 = scmp.ne.s32.totalorder %s97, %s98
      %p110 = scmp.eq.s32.totalorder %s25, 1
      %p111 = por %p109, %p110
      %p113 = scmp.ne.s32.totalorder %s98, %s112
      %p114 = scmp.eq.s32.totalorder %s25, 0
      %p115 = por %p113, %p114
      %s117 = sadd.s32 %s116, 1
      %p120 = scmp.eq.s32.totalorder %s19, 1
      %p121 = scmp.ne.s32.totalorder %s116, %s118
      %p122 = scmp.eq.s32.totalorder %s19, 0
      %p123 = por %p121, %p122
      %p124 = scmp.ne.s32.totalorder %s116, %s118
      %p125 = scmp.eq.s32.totalorder %s24, 1
      %p126 = por %p124, %p125
      %p127 = scmp.ne.s32.totalorder %s118, %s119
      %p128 = scmp.eq.s32.totalorder %s24, 0
      %p129 = por %p127, %p128
      %p130 = scmp.ne.s32.totalorder %s118, %s119
      %p131 = scmp.eq.s32.totalorder %s25, 1
      %p132 = por %p130, %p131
      %p134 = scmp.ne.s32.totalorder %s119, %s133
      %p135 = scmp.eq.s32.totalorder %s25, 0
      %p136 = por %p134, %p135
      %s138 = sadd.s32 %s137, 1
      %p141 = scmp.eq.s32.totalorder %s19, 1
      %p142 = scmp.ne.s32.totalorder %s137, %s139
      %p143 = scmp.eq.s32.totalorder %s19, 0
      %p144 = por %p142, %p143
      %p145 = scmp.ne.s32.totalorder %s137, %s139
      %p146 = scmp.eq.s32.totalorder %s24, 1
      %p147 = por %p145, %p146
      %p148 = scmp.ne.s32.totalorder %s139, %s140
      %p149 = scmp.eq.s32.totalorder %s24, 0
      %p150 = por %p148, %p149
      %p151 = scmp.ne.s32.totalorder %s139, %s140
      %p152 = scmp.eq.s32.totalorder %s25, 1
      %p153 = por %p151, %p152
      %p155 = scmp.ne.s32.totalorder %s140, %s154
      %p156 = scmp.eq.s32.totalorder %s25, 0
      %p157 = por %p155, %p156
      %s158 = ssub.s32 %s19, %s26
      %p159 = scmp.eq.s32.totalorder %s158, 0
      %s161 = sadd.s32 %s160, 1
      %s162 = scalar_select %p159, %s160, %s161
      %p165 = pneg %p159
      %p166 = scmp.eq.s32.totalorder %s19, 1
      %p167 = por %p165, %p166
      %p168 = scmp.ne.s32.totalorder %s160, %s163
      %p169 = scmp.eq.s32.totalorder %s19, 0
      %p170 = por %p168, %p169
      %p171 = scmp.ne.s32.totalorder %s160, %s163
      %p172 = scmp.eq.s32.totalorder %s24, 1
      %p173 = por %p171, %p172
      %p174 = scmp.ne.s32.totalorder %s163, %s164
      %p175 = scmp.eq.s32.totalorder %s24, 0
      %p176 = por %p174, %p175
      %p177 = scmp.ne.s32.totalorder %s163, %s164
      %p178 = scmp.eq.s32.totalorder %s25, 1
      %p179 = por %p177, %p178
      %p181 = scmp.ne.s32.totalorder %s164, %s180
      %p182 = scmp.eq.s32.totalorder %s25, 0
      %p183 = por %p181, %p182
      %p184 = scmp.le.s32.totalorder 1, %s19
      %p185 = scmp.lt.s32.totalorder %s19, 3
      %p186 = pnand %p184, %p185
      %p187 = pneg %p186
      // Predicated region
      $region9: #{tpu_custom_call.1} parent=5 // pred_check
        _
      $region10: #{tpu_custom_call.1} parent=5 // pred_check_branch
        %189 = sbr.rel (%p186) target = $region12
      $region11: #{tpu_custom_call.1} parent=5 // pred_region
        %s190 = ssub.s32 %s19, 1
        // Predicated region
        $region13: #{tpu_custom_call.1} parent=11 // pred_check
          %p191 = pneg %p66
        $region14: #{tpu_custom_call.1} parent=11 // pred_check_branch
          %193 = sbr.rel (%p191) target = $region16
        $region15: #{tpu_custom_call.1} parent=11 // pred_region
          %s195 = ssub.s32 2048, 2048
          %196 = vsyncadd [#allocation6], %s195
          %s197 = sshll.u32 [#allocation5], 4
          %s198 = int_to_ptr.vmem [resolvable:$true] %s197
          %203 = dma.hbm_to_vmem [thread:$0]  %s1, 2048, %s198, [#allocation6], 128, 128, 8
        $region16: #{tpu_custom_call.1} parent=11 // pred_fallthru
          _
        // Predicated region
        $region17: #{tpu_custom_call.1} parent=11 // pred_check
          %p204 = pneg %p87
        $region18: #{tpu_custom_call.1} parent=11 // pred_check_branch
          %206 = sbr.rel (%p204) target = $region20
        $region19: #{tpu_custom_call.1} parent=11 // pred_region
          _
        $region20: #{tpu_custom_call.1} parent=11 // pred_fallthru
          _
        // Predicated region
        $region21: #{tpu_custom_call.1} parent=11 // pred_check
          %p207 = pneg %p108
        $region22: #{tpu_custom_call.1} parent=11 // pred_check_branch
          %209 = sbr.rel (%p207) target = $region24
        $region23: #{tpu_custom_call.1} parent=11 // pred_region
          _
        $region24: #{tpu_custom_call.1} parent=11 // pred_fallthru
          _
        // Predicated region
        $region25: #{tpu_custom_call.1} parent=11 // pred_check
          %p210 = pneg %p129
        $region26: #{tpu_custom_call.1} parent=11 // pred_check_branch
          %212 = sbr.rel (%p210) target = $region28
        $region27: #{tpu_custom_call.1} parent=11 // pred_region
          _
        $region28: #{tpu_custom_call.1} parent=11 // pred_fallthru
          _
        // Predicated region
        $region29: #{tpu_custom_call.1} parent=11 // pred_check
          %p213 = pneg %p150
        $region30: #{tpu_custom_call.1} parent=11 // pred_check_branch
          %215 = sbr.rel (%p213) target = $region32
        $region31: #{tpu_custom_call.1} parent=11 // pred_region
          %s217 = ssub.s32 2048, 2048
          %218 = vsyncadd [#allocation6], %s217
          %s219 = sshll.u32 [#allocation7], 4
          %s220 = int_to_ptr.vmem [resolvable:$true] %s219
          %225 = dma.hbm_to_vmem [thread:$0]  %s5, 2048, %s220, [#allocation6], 128, 128, 8
        $region32: #{tpu_custom_call.1} parent=11 // pred_fallthru
          _
      $region12: #{tpu_custom_call.1} parent=5 // pred_fallthru
        _
      %p226 = scmp.lt.s32.totalorder %s19, 2
      // Predicated region
      $region33: #{tpu_custom_call.1} parent=5 // pred_check
        %p227 = pneg %p226
      $region34: #{tpu_custom_call.1} parent=5 // pred_check_branch
        %229 = sbr.rel (%p227) target = $region36
      $region35: #{tpu_custom_call.1} parent=5 // pred_region
        // Predicated region
        $region37: #{tpu_custom_call.1} parent=35 // pred_check
          %p230 = pneg %p39
        $region38: #{tpu_custom_call.1} parent=35 // pred_check_branch
          %232 = sbr.rel (%p230) target = $region40
        $region39: #{tpu_custom_call.1} parent=35 // pred_region
          %s233 = sand.u32 %s29, 1
          %s234 = scalar_lea.sflag [#allocation3], %s233
          %s235 = sand.u32 %s29, 1
          %s236 = smul.addr %s235, 256
          %s237 = scalar_lea.vmem [#allocation2], %s236
          %s239 = ssub.s32 4096, 4096
          %240 = vsyncadd %s234, %s239
          %s241 = smul.addr %s19, 32
          %s242 = smul.addr %s241, 128
          %s243 = scalar_lea.hbm %s0, %s242
          %s244 = sshll.u32 %s237, 4
          %s245 = int_to_ptr.vmem [resolvable:$true] %s244
          %250 = dma.hbm_to_vmem [thread:$0]  %s243, 4096, %s245, %s234, 128, 128, 8
        $region40: #{tpu_custom_call.1} parent=35 // pred_fallthru
          _
      $region36: #{tpu_custom_call.1} parent=5 // pred_fallthru
        _
      %p251 = scmp.le.s32.totalorder 1, %s19
      %p252 = scmp.lt.s32.totalorder %s19, 3
      %p253 = pnand %p251, %p252
      %p254 = pneg %p253
      // Predicated region
      $region41: #{tpu_custom_call.1} parent=5 // pred_check
        _
      $region42: #{tpu_custom_call.1} parent=5 // pred_check_branch
        %256 = sbr.rel (%p253) target = $region44
      $region43: #{tpu_custom_call.1} parent=5 // pred_region
        %s257 = ssub.s32 %s19, 1
        %s258 = sand.u32 %s32, 1
        %s259 = scalar_lea.sflag [#allocation3], %s258
        %s260 = sand.u32 %s32, 1
        %s261 = smul.addr %s260, 256
        %s262 = scalar_lea.vmem [#allocation2], %s261
        // Predicated region
        $region45: #{tpu_custom_call.1} parent=43 // pred_check
          %p263 = pneg %p45
        $region46: #{tpu_custom_call.1} parent=43 // pred_check_branch
          %265 = sbr.rel (%p263) target = $region48
        $region47: #{tpu_custom_call.1} parent=43 // pred_region
          %266 = dma.done %s259, 4096
        $region48: #{tpu_custom_call.1} parent=43 // pred_fallthru
          _
        // Predicated region
        $region49: #{tpu_custom_call.1} parent=43 // pred_check
          %p267 = pneg %p66
        $region50: #{tpu_custom_call.1} parent=43 // pred_check_branch
          %269 = sbr.rel (%p267) target = $region52
        $region51: #{tpu_custom_call.1} parent=43 // pred_region
          %270 = dma.done [#allocation6], 2048
        $region52: #{tpu_custom_call.1} parent=43 // pred_fallthru
          _
        // Predicated region
        $region53: #{tpu_custom_call.1} parent=43 // pred_check
          %p271 = pneg %p150
        $region54: #{tpu_custom_call.1} parent=43 // pred_check_branch
          %273 = sbr.rel (%p271) target = $region56
        $region55: #{tpu_custom_call.1} parent=43 // pred_region
          %274 = dma.done [#allocation6], 2048
        $region56: #{tpu_custom_call.1} parent=43 // pred_fallthru
          _
        %s275 = sand.u32 %s32, 1
        %s276 = scalar_lea.sflag [#allocation3], %s275
        %s277 = sand.u32 %s32, 1
        %s278 = smul.addr %s277, 256
        %s279 = scalar_lea.vmem [#allocation2], %s278
        %p280 = pneg %p45
        %p281 = pneg %p42
        %p282 = pneg %p66
        %p283 = pneg %p63
        %p284 = pneg %p87
        %p285 = pneg %p84
        %p286 = pneg %p108
        %p287 = pneg %p105
        %p288 = pneg %p129
        %p289 = pneg %p126
        %p290 = pneg %p150
        %p291 = pneg %p147
        %p292 = pneg %p176
        %p293 = pneg %p173
        %s294 = sand.u32 %s163, 1
        %s295 = scalar_lea.sflag [#allocation4], %s294
        %s296 = sand.u32 %s163, 1
        %s297 = smul.addr %s296, 256
        %s298 = scalar_lea.vmem [#allocation8], %s297
        %v299 = vld [vmem:[%s262] sm:$0xff]
        %v300 = vld [vmem:[%s262 + $0x8] sm:$0xff]
        %v301 = vld [vmem:[%s262 + $0x10] sm:$0xff]
        %v302 = vld [vmem:[%s262 + $0x18] sm:$0xff]
        %v303 = vld [vmem:[%s262 + $0x20] sm:$0xff]
        %v304 = vld [vmem:[%s262 + $0x28] sm:$0xff]
        %v305 = vld [vmem:[%s262 + $0x30] sm:$0xff]
        %v306 = vld [vmem:[%s262 + $0x38] sm:$0xff]
        %v307 = vld [vmem:[%s262 + $0x40] sm:$0xff]
        %v308 = vld [vmem:[%s262 + $0x48] sm:$0xff]
        %v309 = vld [vmem:[%s262 + $0x50] sm:$0xff]
        %v310 = vld [vmem:[%s262 + $0x58] sm:$0xff]
        %v311 = vld [vmem:[%s262 + $0x60] sm:$0xff]
        %v312 = vld [vmem:[%s262 + $0x68] sm:$0xff]
        %v313 = vld [vmem:[%s262 + $0x70] sm:$0xff]
        %v314 = vld [vmem:[%s262 + $0x78] sm:$0xff]
        %v315 = vld [vmem:[%s262 + $0x80] sm:$0xff]
        %v316 = vld [vmem:[%s262 + $0x88] sm:$0xff]
        %v317 = vld [vmem:[%s262 + $0x90] sm:$0xff]
        %v318 = vld [vmem:[%s262 + $0x98] sm:$0xff]
        %v319 = vld [vmem:[%s262 + $0xa0] sm:$0xff]
        %v320 = vld [vmem:[%s262 + $0xa8] sm:$0xff]
        %v321 = vld [vmem:[%s262 + $0xb0] sm:$0xff]
        %v322 = vld [vmem:[%s262 + $0xb8] sm:$0xff]
        %v323 = vld [vmem:[%s262 + $0xc0] sm:$0xff]
        %v324 = vld [vmem:[%s262 + $0xc8] sm:$0xff]
        %v325 = vld [vmem:[%s262 + $0xd0] sm:$0xff]
        %v326 = vld [vmem:[%s262 + $0xd8] sm:$0xff]
        %v327 = vld [vmem:[%s262 + $0xe0] sm:$0xff]
        %v328 = vld [vmem:[%s262 + $0xe8] sm:$0xff]
        %v329 = vld [vmem:[%s262 + $0xf0] sm:$0xff]
        %v330 = vld [vmem:[%s262 + $0xf8] sm:$0xff]
        %v331 = vld [vmem:[#allocation5] sm:$0xff]
        %v332 = vld [vmem:[#allocation5 + $0x8] sm:$0xff]
        %v333 = vld [vmem:[#allocation5 + $0x10] sm:$0xff]
        %v334 = vld [vmem:[#allocation5 + $0x18] sm:$0xff]
        %v335 = vld [vmem:[#allocation5 + $0x20] sm:$0xff]
        %v336 = vld [vmem:[#allocation5 + $0x28] sm:$0xff]
        %v337 = vld [vmem:[#allocation5 + $0x30] sm:$0xff]
        %v338 = vld [vmem:[#allocation5 + $0x38] sm:$0xff]
        %v339 = vld [vmem:[#allocation5 + $0x40] sm:$0xff]
        %v340 = vld [vmem:[#allocation5 + $0x48] sm:$0xff]
        %v341 = vld [vmem:[#allocation5 + $0x50] sm:$0xff]
        %v342 = vld [vmem:[#allocation5 + $0x58] sm:$0xff]
        %v343 = vld [vmem:[#allocation5 + $0x60] sm:$0xff]
        %v344 = vld [vmem:[#allocation5 + $0x68] sm:$0xff]
        %v345 = vld [vmem:[#allocation5 + $0x70] sm:$0xff]
        %v346 = vld [vmem:[#allocation5 + $0x78] sm:$0xff]
        %v347 = vld [vmem:[%s2] sm:$0x1]
        %v349 = vlaneseq
        %v350 = vshrl.u32 %v349, 7
        %v351 = vsub.s32 0, %v350
        %v352 = vrot.slane %v347, %v351
        %354 = vmatprep.subr.mxu0 0.0
        %355 = vmatpush1.msra.mxu0 %v331
        %356 = vmatprep.subr.mxu0 0.0
        %357 = vmatpush1.msra.mxu0 %v332
        %358 = vmatprep.subr.mxu0 0.0
        %359 = vmatpush1.msra.mxu0 %v333
        %360 = vmatprep.subr.mxu0 0.0
        %361 = vmatpush1.msra.mxu0 %v334
        %362 = vmatprep.subr.mxu0 0.0
        %363 = vmatpush1.msra.mxu0 %v335
        %364 = vmatprep.subr.mxu0 0.0
        %365 = vmatpush1.msra.mxu0 %v336
        %366 = vmatprep.subr.mxu0 0.0
        %367 = vmatpush1.msra.mxu0 %v337
        %368 = vmatprep.subr.mxu0 0.0
        %369 = vmatpush1.msra.mxu0 %v338
        %370 = vmatprep.subr.mxu0 0.0
        %371 = vmatpush1.msra.mxu0 %v339
        %372 = vmatprep.subr.mxu0 0.0
        %373 = vmatpush1.msra.mxu0 %v340
        %374 = vmatprep.subr.mxu0 0.0
        %375 = vmatpush1.msra.mxu0 %v341
        %376 = vmatprep.subr.mxu0 0.0
        %377 = vmatpush1.msra.mxu0 %v342
        %378 = vmatprep.subr.mxu0 0.0
        %379 = vmatpush1.msra.mxu0 %v343
        %380 = vmatprep.subr.mxu0 0.0
        %381 = vmatpush1.msra.mxu0 %v344
        %382 = vmatprep.subr.mxu0 0.0
        %383 = vmatpush1.msra.mxu0 %v345
        %384 = vmatprep.subr.mxu0 0.0
        %385 = vmatpush1.msra.mxu0 %v346
        %386 = vmatprep.subr.mxu0 0.0
        %387 = vmatpush1.msra.mxu0 0.0
        %388 = vmatprep.subr.mxu0 0.0
        %389 = vmatpush1.msra.mxu0 0.0
        %390 = vmatprep.subr.mxu0 0.0
        %391 = vmatpush1.msra.mxu0 0.0
        %392 = vmatprep.subr.mxu0 0.0
        %393 = vmatpush1.msra.mxu0 0.0
        %394 = vmatprep.subr.mxu0 0.0
        %395 = vmatpush1.msra.mxu0 0.0
        %396 = vmatprep.subr.mxu0 0.0
        %397 = vmatpush1.msra.mxu0 0.0
        %398 = vmatprep.subr.mxu0 0.0
        %399 = vmatpush1.msra.mxu0 0.0
        %400 = vmatprep.subr.mxu0 0.0
        %401 = vmatpush1.msra.mxu0 0.0
        %402 = vmatprep.subr.mxu0 0.0
        %403 = vmatpush1.msra.mxu0 0.0
        %404 = vmatprep.subr.mxu0 0.0
        %405 = vmatpush1.msra.mxu0 0.0
        %406 = vmatprep.subr.mxu0 0.0
        %407 = vmatpush1.msra.mxu0 0.0
        %408 = vmatprep.subr.mxu0 0.0
        %409 = vmatpush1.msra.mxu0 0.0
        %410 = vmatprep.subr.mxu0 0.0
        %411 = vmatpush1.msra.mxu0 0.0
        %412 = vmatprep.subr.mxu0 0.0
        %413 = vmatpush1.msra.mxu0 0.0
        %414 = vmatprep.subr.mxu0 0.0
        %415 = vmatpush1.msra.mxu0 0.0
        %416 = vmatprep.subr.mxu0 0.0
        %417 = vmatpush1.msra.mxu0 0.0
        %418 = vmatprep.mubr.f32.mxu0 0.0
        %419 = vmatmul.mubr.f32.gmra.mrb[0].mxu0 %v299
        %v420 = vpop.f32.mrb[0].mxu0
        %v421 = vadd.f32 %v352, %v420
        %v422 = vpop.f32.mrb[0].mxu0
        %423 = vmatprep.mubr.f32.mxu0 0.0
        %424 = vmatmul.mubr.f32.gmra.mrb[0].mxu0 %v300
        %v425 = vpop.f32.mrb[0].mxu0
        %v426 = vadd.f32 %v352, %v425
        %v427 = vpop.f32.mrb[0].mxu0
        %428 = vmatprep.mubr.f32.mxu0 0.0
        %429 = vmatmul.mubr.f32.gmra.mrb[0].mxu0 %v301
        %v430 = vpop.f32.mrb[0].mxu0
        %v431 = vadd.f32 %v352, %v430
        %v432 = vpop.f32.mrb[0].mxu0
        %433 = vmatprep.mubr.f32.mxu0 0.0
        %434 = vmatmul.mubr.f32.gmra.mrb[0].mxu0 %v302
        %v435 = vpop.f32.mrb[0].mxu0
        %v436 = vadd.f32 %v352, %v435
        %v437 = vpop.f32.mrb[0].mxu0
        %438 = vmatprep.mubr.f32.mxu0 0.0
        %439 = vmatmul.mubr.f32.gmra.mrb[0].mxu0 %v303
        %v440 = vpop.f32.mrb[0].mxu0
        %v441 = vadd.f32 %v352, %v440
        %v442 = vpop.f32.mrb[0].mxu0
        %443 = vmatprep.mubr.f32.mxu0 0.0
        %444 = vmatmul.mubr.f32.gmra.mrb[0].mxu0 %v304
        %v445 = vpop.f32.mrb[0].mxu0
        %v446 = vadd.f32 %v352, %v445
        %v447 = vpop.f32.mrb[0].mxu0
        %448 = vmatprep.mubr.f32.mxu0 0.0
        %449 = vmatmul.mubr.f32.gmra.mrb[0].mxu0 %v305
        %v450 = vpop.f32.mrb[0].mxu0
        %v451 = vadd.f32 %v352, %v450
        %v452 = vpop.f32.mrb[0].mxu0
        %453 = vmatprep.mubr.f32.mxu0 0.0
        %454 = vmatmul.mubr.f32.gmra.mrb[0].mxu0 %v306
        %v455 = vpop.f32.mrb[0].mxu0
        %v456 = vadd.f32 %v352, %v455
        %v457 = vpop.f32.mrb[0].mxu0
        %458 = vmatprep.mubr.f32.mxu0 0.0
        %459 = vmatmul.mubr.f32.gmra.mrb[0].mxu0 %v307
        %v460 = vpop.f32.mrb[0].mxu0
        %v461 = vadd.f32 %v352, %v460
        %v462 = vpop.f32.mrb[0].mxu0
        %463 = vmatprep.mubr.f32.mxu0 0.0
        %464 = vmatmul.mubr.f32.gmra.mrb[0].mxu0 %v308
        %v465 = vpop.f32.mrb[0].mxu0
        %v466 = vadd.f32 %v352, %v465
        %v467 = vpop.f32.mrb[0].mxu0
        %468 = vmatprep.mubr.f32.mxu0 0.0
        %469 = vmatmul.mubr.f32.gmra.mrb[0].mxu0 %v309
        %v470 = vpop.f32.mrb[0].mxu0
        %v471 = vadd.f32 %v352, %v470
        %v472 = vpop.f32.mrb[0].mxu0
        %473 = vmatprep.mubr.f32.mxu0 0.0
        %474 = vmatmul.mubr.f32.gmra.mrb[0].mxu0 %v310
        %v475 = vpop.f32.mrb[0].mxu0
        %v476 = vadd.f32 %v352, %v475
        %v477 = vpop.f32.mrb[0].mxu0
        %478 = vmatprep.mubr.f32.mxu0 0.0
        %479 = vmatmul.mubr.f32.gmra.mrb[0].mxu0 %v311
        %v480 = vpop.f32.mrb[0].mxu0
        %v481 = vadd.f32 %v352, %v480
        %v482 = vpop.f32.mrb[0].mxu0
        %483 = vmatprep.mubr.f32.mxu0 0.0
        %484 = vmatmul.mubr.f32.gmra.mrb[0].mxu0 %v312
        %v485 = vpop.f32.mrb[0].mxu0
        %v486 = vadd.f32 %v352, %v485
        %v487 = vpop.f32.mrb[0].mxu0
        %488 = vmatprep.mubr.f32.mxu0 0.0
        %489 = vmatmul.mubr.f32.gmra.mrb[0].mxu0 %v313
        %v490 = vpop.f32.mrb[0].mxu0
        %v491 = vadd.f32 %v352, %v490
        %v492 = vpop.f32.mrb[0].mxu0
        %493 = vmatprep.mubr.f32.mxu0 0.0
        %494 = vmatmul.mubr.f32.gmra.mrb[0].mxu0 %v314
        %v495 = vpop.f32.mrb[0].mxu0
        %v496 = vadd.f32 %v352, %v495
        %v497 = vpop.f32.mrb[0].mxu0
        %498 = vmatprep.mubr.f32.mxu0 0.0
        %499 = vmatmul.mubr.f32.gmra.mrb[0].mxu0 %v315
        %v500 = vpop.f32.mrb[0].mxu0
        %v501 = vadd.f32 %v352, %v500
        %v502 = vpop.f32.mrb[0].mxu0
        %503 = vmatprep.mubr.f32.mxu0 0.0
        %504 = vmatmul.mubr.f32.gmra.mrb[0].mxu0 %v316
        %v505 = vpop.f32.mrb[0].mxu0
        %v506 = vadd.f32 %v352, %v505
        %v507 = vpop.f32.mrb[0].mxu0
        %508 = vmatprep.mubr.f32.mxu0 0.0
        %509 = vmatmul.mubr.f32.gmra.mrb[0].mxu0 %v317
        %v510 = vpop.f32.mrb[0].mxu0
        %v511 = vadd.f32 %v352, %v510
        %v512 = vpop.f32.mrb[0].mxu0
        %513 = vmatprep.mubr.f32.mxu0 0.0
        %514 = vmatmul.mubr.f32.gmra.mrb[0].mxu0 %v318
        %v515 = vpop.f32.mrb[0].mxu0
        %v516 = vadd.f32 %v352, %v515
        %v517 = vpop.f32.mrb[0].mxu0
        %518 = vmatprep.mubr.f32.mxu0 0.0
        %519 = vmatmul.mubr.f32.gmra.mrb[0].mxu0 %v319
        %v520 = vpop.f32.mrb[0].mxu0
        %v521 = vadd.f32 %v352, %v520
        %v522 = vpop.f32.mrb[0].mxu0
        %523 = vmatprep.mubr.f32.mxu0 0.0
        %524 = vmatmul.mubr.f32.gmra.mrb[0].mxu0 %v320
        %v525 = vpop.f32.mrb[0].mxu0
        %v526 = vadd.f32 %v352, %v525
        %v527 = vpop.f32.mrb[0].mxu0
        %528 = vmatprep.mubr.f32.mxu0 0.0
        %529 = vmatmul.mubr.f32.gmra.mrb[0].mxu0 %v321
        %v530 = vpop.f32.mrb[0].mxu0
        %v531 = vadd.f32 %v352, %v530
        %v532 = vpop.f32.mrb[0].mxu0
        %533 = vmatprep.mubr.f32.mxu0 0.0
        %534 = vmatmul.mubr.f32.gmra.mrb[0].mxu0 %v322
        %v535 = vpop.f32.mrb[0].mxu0
        %v536 = vadd.f32 %v352, %v535
        %v537 = vpop.f32.mrb[0].mxu0
        %538 = vmatprep.mubr.f32.mxu0 0.0
        %539 = vmatmul.mubr.f32.gmra.mrb[0].mxu0 %v323
        %v540 = vpop.f32.mrb[0].mxu0
        %v541 = vadd.f32 %v352, %v540
        %v542 = vpop.f32.mrb[0].mxu0
        %543 = vmatprep.mubr.f32.mxu0 0.0
        %544 = vmatmul.mubr.f32.gmra.mrb[0].mxu0 %v324
        %v545 = vpop.f32.mrb[0].mxu0
        %v546 = vadd.f32 %v352, %v545
        %v547 = vpop.f32.mrb[0].mxu0
        %548 = vmatprep.mubr.f32.mxu0 0.0
        %549 = vmatmul.mubr.f32.gmra.mrb[0].mxu0 %v325
        %v550 = vpop.f32.mrb[0].mxu0
        %v551 = vadd.f32 %v352, %v550
        %v552 = vpop.f32.mrb[0].mxu0
        %553 = vmatprep.mubr.f32.mxu0 0.0
        %554 = vmatmul.mubr.f32.gmra.mrb[0].mxu0 %v326
        %v555 = vpop.f32.mrb[0].mxu0
        %v556 = vadd.f32 %v352, %v555
        %v557 = vpop.f32.mrb[0].mxu0
        %558 = vmatprep.mubr.f32.mxu0 0.0
        %559 = vmatmul.mubr.f32.gmra.mrb[0].mxu0 %v327
        %v560 = vpop.f32.mrb[0].mxu0
        %v561 = vadd.f32 %v352, %v560
        %v562 = vpop.f32.mrb[0].mxu0
        %563 = vmatprep.mubr.f32.mxu0 0.0
        %564 = vmatmul.mubr.f32.gmra.mrb[0].mxu0 %v328
        %v565 = vpop.f32.mrb[0].mxu0
        %v566 = vadd.f32 %v352, %v565
        %v567 = vpop.f32.mrb[0].mxu0
        %568 = vmatprep.mubr.f32.mxu0 0.0
        %569 = vmatmul.mubr.f32.gmra.mrb[0].mxu0 %v329
        %v570 = vpop.f32.mrb[0].mxu0
        %v571 = vadd.f32 %v352, %v570
        %v572 = vpop.f32.mrb[0].mxu0
        %573 = vmatprep.mubr.f32.mxu0 0.0
        %574 = vmatmul.mubr.f32.gmra.mrb[0].mxu0 %v330
        %v575 = vpop.f32.mrb[0].mxu0
        %v576 = vadd.f32 %v352, %v575
        %v577 = vpop.f32.mrb[0].mxu0
        %578 = vdwg.mxu0
        %v579 = vadd.f32 %v421, %v426
        %v580 = vadd.f32 %v579, %v431
        %v581 = vadd.f32 %v580, %v436
        %v582 = vadd.f32 %v581, %v441
        %v583 = vadd.f32 %v582, %v446
        %v584 = vadd.f32 %v583, %v451
        %v585 = vadd.f32 %v584, %v456
        %v586 = vadd.f32 %v585, %v461
        %v587 = vadd.f32 %v586, %v466
        %v588 = vadd.f32 %v587, %v471
        %v589 = vadd.f32 %v588, %v476
        %v590 = vadd.f32 %v589, %v481
        %v591 = vadd.f32 %v590, %v486
        %v592 = vadd.f32 %v591, %v491
        %v593 = vadd.f32 %v592, %v496
        %v594 = vadd.f32 %v593, %v501
        %v595 = vadd.f32 %v594, %v506
        %v596 = vadd.f32 %v595, %v511
        %v597 = vadd.f32 %v596, %v516
        %v598 = vadd.f32 %v597, %v521
        %v599 = vadd.f32 %v598, %v526
        %v600 = vadd.f32 %v599, %v531
        %v601 = vadd.f32 %v600, %v536
        %v602 = vadd.f32 %v601, %v541
        %v603 = vadd.f32 %v602, %v546
        %v604 = vadd.f32 %v603, %v551
        %v605 = vadd.f32 %v604, %v556
        %v606 = vadd.f32 %v605, %v561
        %v607 = vadd.f32 %v606, %v566
        %v608 = vadd.f32 %v607, %v571
        %v609 = vadd.f32 %v608, %v576
        %v610 = vrot.slane %v609, 4
        %v611 = vadd.f32 %v609, %v610
        %v612 = vrot.slane %v611, 2
        %v613 = vadd.f32 %v611, %v612
        %v614 = vrot.slane %v613, 1
        %v615 = vadd.f32 %v613, %v614
        %v616 = vld [vmem:[#allocation7] sm:$0xff]
        %v617 = vld [vmem:[#allocation7 + $0x8] sm:$0xff]
        %v618 = vld [vmem:[#allocation7 + $0x10] sm:$0xff]
        %v619 = vld [vmem:[#allocation7 + $0x18] sm:$0xff]
        %v620 = vld [vmem:[#allocation7 + $0x20] sm:$0xff]
        %v621 = vld [vmem:[#allocation7 + $0x28] sm:$0xff]
        %v622 = vld [vmem:[#allocation7 + $0x30] sm:$0xff]
        %v623 = vld [vmem:[#allocation7 + $0x38] sm:$0xff]
        %v624 = vld [vmem:[#allocation7 + $0x40] sm:$0xff]
        %v625 = vld [vmem:[#allocation7 + $0x48] sm:$0xff]
        %v626 = vld [vmem:[#allocation7 + $0x50] sm:$0xff]
        %v627 = vld [vmem:[#allocation7 + $0x58] sm:$0xff]
        %v628 = vld [vmem:[#allocation7 + $0x60] sm:$0xff]
        %v629 = vld [vmem:[#allocation7 + $0x68] sm:$0xff]
        %v630 = vld [vmem:[#allocation7 + $0x70] sm:$0xff]
        %v631 = vld [vmem:[#allocation7 + $0x78] sm:$0xff]
        %632 = vmatprep.subr.mxu0 0.0
        %633 = vmatpush1.msra.mxu0 %v616
        %634 = vmatprep.subr.mxu0 0.0
        %635 = vmatpush1.msra.mxu0 %v617
        %636 = vmatprep.subr.mxu0 0.0
        %637 = vmatpush1.msra.mxu0 %v618
        %638 = vmatprep.subr.mxu0 0.0
        %639 = vmatpush1.msra.mxu0 %v619
        %640 = vmatprep.subr.mxu0 0.0
        %641 = vmatpush1.msra.mxu0 %v620
        %642 = vmatprep.subr.mxu0 0.0
        %643 = vmatpush1.msra.mxu0 %v621
        %644 = vmatprep.subr.mxu0 0.0
        %645 = vmatpush1.msra.mxu0 %v622
        %646 = vmatprep.subr.mxu0 0.0
        %647 = vmatpush1.msra.mxu0 %v623
        %648 = vmatprep.subr.mxu0 0.0
        %649 = vmatpush1.msra.mxu0 %v624
        %650 = vmatprep.subr.mxu0 0.0
        %651 = vmatpush1.msra.mxu0 %v625
        %652 = vmatprep.subr.mxu0 0.0
        %653 = vmatpush1.msra.mxu0 %v626
        %654 = vmatprep.subr.mxu0 0.0
        %655 = vmatpush1.msra.mxu0 %v627
        %656 = vmatprep.subr.mxu0 0.0
        %657 = vmatpush1.msra.mxu0 %v628
        %658 = vmatprep.subr.mxu0 0.0
        %659 = vmatpush1.msra.mxu0 %v629
        %660 = vmatprep.subr.mxu0 0.0
        %661 = vmatpush1.msra.mxu0 %v630
        %662 = vmatprep.subr.mxu0 0.0
        %663 = vmatpush1.msra.mxu0 %v631
        %664 = vmatprep.subr.mxu0 0.0
        %665 = vmatpush1.msra.mxu0 0.0
        %666 = vmatprep.subr.mxu0 0.0
        %667 = vmatpush1.msra.mxu0 0.0
        %668 = vmatprep.subr.mxu0 0.0
        %669 = vmatpush1.msra.mxu0 0.0
        %670 = vmatprep.subr.mxu0 0.0
        %671 = vmatpush1.msra.mxu0 0.0
        %672 = vmatprep.subr.mxu0 0.0
        %673 = vmatpush1.msra.mxu0 0.0
        %674 = vmatprep.subr.mxu0 0.0
        %675 = vmatpush1.msra.mxu0 0.0
        %676 = vmatprep.subr.mxu0 0.0
        %677 = vmatpush1.msra.mxu0 0.0
        %678 = vmatprep.subr.mxu0 0.0
        %679 = vmatpush1.msra.mxu0 0.0
        %680 = vmatprep.subr.mxu0 0.0
        %681 = vmatpush1.msra.mxu0 0.0
        %682 = vmatprep.subr.mxu0 0.0
        %683 = vmatpush1.msra.mxu0 0.0
        %684 = vmatprep.subr.mxu0 0.0
        %685 = vmatpush1.msra.mxu0 0.0
        %686 = vmatprep.subr.mxu0 0.0
        %687 = vmatpush1.msra.mxu0 0.0
        %688 = vmatprep.subr.mxu0 0.0
        %689 = vmatpush1.msra.mxu0 0.0
        %690 = vmatprep.subr.mxu0 0.0
        %691 = vmatpush1.msra.mxu0 0.0
        %692 = vmatprep.subr.mxu0 0.0
        %693 = vmatpush1.msra.mxu0 0.0
        %694 = vmatprep.subr.mxu0 0.0
        %695 = vmatpush1.msra.mxu0 0.0
        %696 = vmatprep.mubr.f32.mxu0 0.0
        %697 = vmatmul.mubr.f32.gmra.mrb[0].mxu0 %v615
        %v698 = vpop.f32.mrb[0].mxu0
        %v699 = vadd.f32 0.0, %v698
        %v700 = vpop.f32.mrb[0].mxu0
        %701 = vdwg.mxu0
        %v702 = vmul.f32 %v699, 0.0009765625
        %v703 = vlaneseq
        %v704 = vshrl.u32 %v703, 7
        %v705 = vsub.s32 0, %v704
        %v706 = vrot.slane %v702, %v705
        %v707 = vsub.f32 %v421, %v706
        %v708 = vsub.f32 %v426, %v706
        %v709 = vsub.f32 %v431, %v706
        %v710 = vsub.f32 %v436, %v706
        %v711 = vsub.f32 %v441, %v706
        %v712 = vsub.f32 %v446, %v706
        %v713 = vsub.f32 %v451, %v706
        %v714 = vsub.f32 %v456, %v706
        %v715 = vsub.f32 %v461, %v706
        %v716 = vsub.f32 %v466, %v706
        %v717 = vsub.f32 %v471, %v706
        %v718 = vsub.f32 %v476, %v706
        %v719 = vsub.f32 %v481, %v706
        %v720 = vsub.f32 %v486, %v706
        %v721 = vsub.f32 %v491, %v706
        %v722 = vsub.f32 %v496, %v706
        %v723 = vsub.f32 %v501, %v706
        %v724 = vsub.f32 %v506, %v706
        %v725 = vsub.f32 %v511, %v706
        %v726 = vsub.f32 %v516, %v706
        %v727 = vsub.f32 %v521, %v706
        %v728 = vsub.f32 %v526, %v706
        %v729 = vsub.f32 %v531, %v706
        %v730 = vsub.f32 %v536, %v706
        %v731 = vsub.f32 %v541, %v706
        %v732 = vsub.f32 %v546, %v706
        %v733 = vsub.f32 %v551, %v706
        %v734 = vsub.f32 %v556, %v706
        %v735 = vsub.f32 %v561, %v706
        %v736 = vsub.f32 %v566, %v706
        %v737 = vsub.f32 %v571, %v706
        %v738 = vsub.f32 %v576, %v706
        %v739 = vmul.f32 %v707, %v707
        %v740 = vmul.f32 %v708, %v708
        %v741 = vmul.f32 %v709, %v709
        %v742 = vmul.f32 %v710, %v710
        %v743 = vmul.f32 %v711, %v711
        %v744 = vmul.f32 %v712, %v712
        %v745 = vmul.f32 %v713, %v713
        %v746 = vmul.f32 %v714, %v714
        %v747 = vmul.f32 %v715, %v715
        %v748 = vmul.f32 %v716, %v716
        %v749 = vmul.f32 %v717, %v717
        %v750 = vmul.f32 %v718, %v718
        %v751 = vmul.f32 %v719, %v719
        %v752 = vmul.f32 %v720, %v720
        %v753 = vmul.f32 %v721, %v721
        %v754 = vmul.f32 %v722, %v722
        %v755 = vmul.f32 %v723, %v723
        %v756 = vmul.f32 %v724, %v724
        %v757 = vmul.f32 %v725, %v725
        %v758 = vmul.f32 %v726, %v726
        %v759 = vmul.f32 %v727, %v727
        %v760 = vmul.f32 %v728, %v728
        %v761 = vmul.f32 %v729, %v729
        %v762 = vmul.f32 %v730, %v730
        %v763 = vmul.f32 %v731, %v731
        %v764 = vmul.f32 %v732, %v732
        %v765 = vmul.f32 %v733, %v733
        %v766 = vmul.f32 %v734, %v734
        %v767 = vmul.f32 %v735, %v735
        %v768 = vmul.f32 %v736, %v736
        %v769 = vmul.f32 %v737, %v737
        %v770 = vmul.f32 %v738, %v738
        %v771 = vadd.f32 %v739, %v740
        %v772 = vadd.f32 %v771, %v741
        %v773 = vadd.f32 %v772, %v742
        %v774 = vadd.f32 %v773, %v743
        %v775 = vadd.f32 %v774, %v744
        %v776 = vadd.f32 %v775, %v745
        %v777 = vadd.f32 %v776, %v746
        %v778 = vadd.f32 %v777, %v747
        %v779 = vadd.f32 %v778, %v748
        %v780 = vadd.f32 %v779, %v749
        %v781 = vadd.f32 %v780, %v750
        %v782 = vadd.f32 %v781, %v751
        %v783 = vadd.f32 %v782, %v752
        %v784 = vadd.f32 %v783, %v753
        %v785 = vadd.f32 %v784, %v754
        %v786 = vadd.f32 %v785, %v755
        %v787 = vadd.f32 %v786, %v756
        %v788 = vadd.f32 %v787, %v757
        %v789 = vadd.f32 %v788, %v758
        %v790 = vadd.f32 %v789, %v759
        %v791 = vadd.f32 %v790, %v760
        %v792 = vadd.f32 %v791, %v761
        %v793 = vadd.f32 %v792, %v762
        %v794 = vadd.f32 %v793, %v763
        %v795 = vadd.f32 %v794, %v764
        %v796 = vadd.f32 %v795, %v765
        %v797 = vadd.f32 %v796, %v766
        %v798 = vadd.f32 %v797, %v767
        %v799 = vadd.f32 %v798, %v768
        %v800 = vadd.f32 %v799, %v769
        %v801 = vadd.f32 %v800, %v770
        %v802 = vrot.slane %v801, 4
        %v803 = vadd.f32 %v801, %v802
        %v804 = vrot.slane %v803, 2
        %v805 = vadd.f32 %v803, %v804
        %v806 = vrot.slane %v805, 1
        %v807 = vadd.f32 %v805, %v806
        %808 = vmatprep.subr.mxu0 0.0
        %809 = vmatpush1.msra.mxu0 %v616
        %810 = vmatprep.subr.mxu0 0.0
        %811 = vmatpush1.msra.mxu0 %v617
        %812 = vmatprep.subr.mxu0 0.0
        %813 = vmatpush1.msra.mxu0 %v618
        %814 = vmatprep.subr.mxu0 0.0
        %815 = vmatpush1.msra.mxu0 %v619
        %816 = vmatprep.subr.mxu0 0.0
        %817 = vmatpush1.msra.mxu0 %v620
        %818 = vmatprep.subr.mxu0 0.0
        %819 = vmatpush1.msra.mxu0 %v621
        %820 = vmatprep.subr.mxu0 0.0
        %821 = vmatpush1.msra.mxu0 %v622
        %822 = vmatprep.subr.mxu0 0.0
        %823 = vmatpush1.msra.mxu0 %v623
        %824 = vmatprep.subr.mxu0 0.0
        %825 = vmatpush1.msra.mxu0 %v624
        %826 = vmatprep.subr.mxu0 0.0
        %827 = vmatpush1.msra.mxu0 %v625
        %828 = vmatprep.subr.mxu0 0.0
        %829 = vmatpush1.msra.mxu0 %v626
        %830 = vmatprep.subr.mxu0 0.0
        %831 = vmatpush1.msra.mxu0 %v627
        %832 = vmatprep.subr.mxu0 0.0
        %833 = vmatpush1.msra.mxu0 %v628
        %834 = vmatprep.subr.mxu0 0.0
        %835 = vmatpush1.msra.mxu0 %v629
        %836 = vmatprep.subr.mxu0 0.0
        %837 = vmatpush1.msra.mxu0 %v630
        %838 = vmatprep.subr.mxu0 0.0
        %839 = vmatpush1.msra.mxu0 %v631
        %840 = vmatprep.subr.mxu0 0.0
        %841 = vmatpush1.msra.mxu0 0.0
        %842 = vmatprep.subr.mxu0 0.0
        %843 = vmatpush1.msra.mxu0 0.0
        %844 = vmatprep.subr.mxu0 0.0
        %845 = vmatpush1.msra.mxu0 0.0
        %846 = vmatprep.subr.mxu0 0.0
        %847 = vmatpush1.msra.mxu0 0.0
        %848 = vmatprep.subr.mxu0 0.0
        %849 = vmatpush1.msra.mxu0 0.0
        %850 = vmatprep.subr.mxu0 0.0
        %851 = vmatpush1.msra.mxu0 0.0
        %852 = vmatprep.subr.mxu0 0.0
        %853 = vmatpush1.msra.mxu0 0.0
        %854 = vmatprep.subr.mxu0 0.0
        %855 = vmatpush1.msra.mxu0 0.0
        %856 = vmatprep.subr.mxu0 0.0
        %857 = vmatpush1.msra.mxu0 0.0
        %858 = vmatprep.subr.mxu0 0.0
        %859 = vmatpush1.msra.mxu0 0.0
        %860 = vmatprep.subr.mxu0 0.0
        %861 = vmatpush1.msra.mxu0 0.0
        %862 = vmatprep.subr.mxu0 0.0
        %863 = vmatpush1.msra.mxu0 0.0
        %864 = vmatprep.subr.mxu0 0.0
        %865 = vmatpush1.msra.mxu0 0.0
        %866 = vmatprep.subr.mxu0 0.0
        %867 = vmatpush1.msra.mxu0 0.0
        %868 = vmatprep.subr.mxu0 0.0
        %869 = vmatpush1.msra.mxu0 0.0
        %870 = vmatprep.subr.mxu0 0.0
        %871 = vmatpush1.msra.mxu0 0.0
        %872 = vmatprep.mubr.f32.mxu0 0.0
        %873 = vmatmul.mubr.f32.gmra.mrb[0].mxu0 %v807
        %v874 = vpop.f32.mrb[0].mxu0
        %v875 = vadd.f32 0.0, %v874
        %v876 = vpop.f32.mrb[0].mxu0
        %877 = vdwg.mxu0
        %v878 = vmul.f32 %v875, 0.0009765625
        %v879 = vadd.f32 %v878, 1e-05
        %v880 = vrsqrt.pop %v879
        %v881 = vld [vmem:[%s3] sm:$0x1]
        %v882 = vmul.f32 %v880, %v881
        %v883 = vlaneseq
        %v884 = vshrl.u32 %v883, 7
        %v885 = vsub.s32 0, %v884
        %v886 = vrot.slane %v882, %v885
        %v887 = vmul.f32 %v707, %v886
        %v888 = vmul.f32 %v708, %v886
        %v889 = vmul.f32 %v709, %v886
        %v890 = vmul.f32 %v710, %v886
        %v891 = vmul.f32 %v711, %v886
        %v892 = vmul.f32 %v712, %v886
        %v893 = vmul.f32 %v713, %v886
        %v894 = vmul.f32 %v714, %v886
        %v895 = vmul.f32 %v715, %v886
        %v896 = vmul.f32 %v716, %v886
        %v897 = vmul.f32 %v717, %v886
        %v898 = vmul.f32 %v718, %v886
        %v899 = vmul.f32 %v719, %v886
        %v900 = vmul.f32 %v720, %v886
        %v901 = vmul.f32 %v721, %v886
        %v902 = vmul.f32 %v722, %v886
        %v903 = vmul.f32 %v723, %v886
        %v904 = vmul.f32 %v724, %v886
        %v905 = vmul.f32 %v725, %v886
        %v906 = vmul.f32 %v726, %v886
        %v907 = vmul.f32 %v727, %v886
        %v908 = vmul.f32 %v728, %v886
        %v909 = vmul.f32 %v729, %v886
        %v910 = vmul.f32 %v730, %v886
        %v911 = vmul.f32 %v731, %v886
        %v912 = vmul.f32 %v732, %v886
        %v913 = vmul.f32 %v733, %v886
        %v914 = vmul.f32 %v734, %v886
        %v915 = vmul.f32 %v735, %v886
        %v916 = vmul.f32 %v736, %v886
        %v917 = vmul.f32 %v737, %v886
        %v918 = vmul.f32 %v738, %v886
        %v919 = vld [vmem:[%s4] sm:$0x1]
        %v921 = vlaneseq
        %v922 = vshrl.u32 %v921, 7
        %v923 = vsub.s32 0, %v922
        %v924 = vrot.slane %v919, %v923
        %v926 = vadd.f32 %v887, %v924
        %v927 = vadd.f32 %v888, %v924
        %v928 = vadd.f32 %v889, %v924
        %v929 = vadd.f32 %v890, %v924
        %v930 = vadd.f32 %v891, %v924
        %v931 = vadd.f32 %v892, %v924
        %v932 = vadd.f32 %v893, %v924
        %v933 = vadd.f32 %v894, %v924
        %v934 = vadd.f32 %v895, %v924
        %v935 = vadd.f32 %v896, %v924
        %v936 = vadd.f32 %v897, %v924
        %v937 = vadd.f32 %v898, %v924
        %v938 = vadd.f32 %v899, %v924
        %v939 = vadd.f32 %v900, %v924
        %v940 = vadd.f32 %v901, %v924
        %v941 = vadd.f32 %v902, %v924
        %v942 = vadd.f32 %v903, %v924
        %v943 = vadd.f32 %v904, %v924
        %v944 = vadd.f32 %v905, %v924
        %v945 = vadd.f32 %v906, %v924
        %v946 = vadd.f32 %v907, %v924
        %v947 = vadd.f32 %v908, %v924
        %v948 = vadd.f32 %v909, %v924
        %v949 = vadd.f32 %v910, %v924
        %v950 = vadd.f32 %v911, %v924
        %v951 = vadd.f32 %v912, %v924
        %v952 = vadd.f32 %v913, %v924
        %v953 = vadd.f32 %v914, %v924
        %v954 = vadd.f32 %v915, %v924
        %v955 = vadd.f32 %v916, %v924
        %v956 = vadd.f32 %v917, %v924
        %v957 = vadd.f32 %v918, %v924
        %v958 = vmax.f32 %v926, 0.0
        %v959 = vmax.f32 %v927, 0.0
        %v960 = vmax.f32 %v928, 0.0
        %v961 = vmax.f32 %v929, 0.0
        %v962 = vmax.f32 %v930, 0.0
        %v963 = vmax.f32 %v931, 0.0
        %v964 = vmax.f32 %v932, 0.0
        %v965 = vmax.f32 %v933, 0.0
        %v966 = vmax.f32 %v934, 0.0
        %v967 = vmax.f32 %v935, 0.0
        %v968 = vmax.f32 %v936, 0.0
        %v969 = vmax.f32 %v937, 0.0
        %v970 = vmax.f32 %v938, 0.0
        %v971 = vmax.f32 %v939, 0.0
        %v972 = vmax.f32 %v940, 0.0
        %v973 = vmax.f32 %v941, 0.0
        %v974 = vmax.f32 %v942, 0.0
        %v975 = vmax.f32 %v943, 0.0
        %v976 = vmax.f32 %v944, 0.0
        %v977 = vmax.f32 %v945, 0.0
        %v978 = vmax.f32 %v946, 0.0
        %v979 = vmax.f32 %v947, 0.0
        %v980 = vmax.f32 %v948, 0.0
        %v981 = vmax.f32 %v949, 0.0
        %v982 = vmax.f32 %v950, 0.0
        %v983 = vmax.f32 %v951, 0.0
        %v984 = vmax.f32 %v952, 0.0
        %v985 = vmax.f32 %v953, 0.0
        %v986 = vmax.f32 %v954, 0.0
        %v987 = vmax.f32 %v955, 0.0
        %v988 = vmax.f32 %v956, 0.0
        %v989 = vmax.f32 %v957, 0.0
        %990 = vst [vmem:[%s298] sm:$0xff] %v958
        %991 = vst [vmem:[%s298 + $0x8] sm:$0xff] %v959
        %992 = vst [vmem:[%s298 + $0x10] sm:$0xff] %v960
        %993 = vst [vmem:[%s298 + $0x18] sm:$0xff] %v961
        %994 = vst [vmem:[%s298 + $0x20] sm:$0xff] %v962
        %995 = vst [vmem:[%s298 + $0x28] sm:$0xff] %v963
        %996 = vst [vmem:[%s298 + $0x30] sm:$0xff] %v964
        %997 = vst [vmem:[%s298 + $0x38] sm:$0xff] %v965
        %998 = vst [vmem:[%s298 + $0x40] sm:$0xff] %v966
        %999 = vst [vmem:[%s298 + $0x48] sm:$0xff] %v967
        %1000 = vst [vmem:[%s298 + $0x50] sm:$0xff] %v968
        %1001 = vst [vmem:[%s298 + $0x58] sm:$0xff] %v969
        %1002 = vst [vmem:[%s298 + $0x60] sm:$0xff] %v970
        %1003 = vst [vmem:[%s298 + $0x68] sm:$0xff] %v971
        %1004 = vst [vmem:[%s298 + $0x70] sm:$0xff] %v972
        %1005 = vst [vmem:[%s298 + $0x78] sm:$0xff] %v973
        %1006 = vst [vmem:[%s298 + $0x80] sm:$0xff] %v974
        %1007 = vst [vmem:[%s298 + $0x88] sm:$0xff] %v975
        %1008 = vst [vmem:[%s298 + $0x90] sm:$0xff] %v976
        %1009 = vst [vmem:[%s298 + $0x98] sm:$0xff] %v977
        %1010 = vst [vmem:[%s298 + $0xa0] sm:$0xff] %v978
        %1011 = vst [vmem:[%s298 + $0xa8] sm:$0xff] %v979
        %1012 = vst [vmem:[%s298 + $0xb0] sm:$0xff] %v980
        %1013 = vst [vmem:[%s298 + $0xb8] sm:$0xff] %v981
        %1014 = vst [vmem:[%s298 + $0xc0] sm:$0xff] %v982
        %1015 = vst [vmem:[%s298 + $0xc8] sm:$0xff] %v983
        %1016 = vst [vmem:[%s298 + $0xd0] sm:$0xff] %v984
        %1017 = vst [vmem:[%s298 + $0xd8] sm:$0xff] %v985
        %1018 = vst [vmem:[%s298 + $0xe0] sm:$0xff] %v986
        %1019 = vst [vmem:[%s298 + $0xe8] sm:$0xff] %v987
        %1020 = vst [vmem:[%s298 + $0xf0] sm:$0xff] %v988
        %1021 = vst [vmem:[%s298 + $0xf8] sm:$0xff] %v989
        %s1022 = sand.u32 %s163, 1
        %s1023 = scalar_lea.sflag [#allocation4], %s1022
        %s1024 = sand.u32 %s163, 1
        %s1025 = smul.addr %s1024, 256
        %s1026 = scalar_lea.vmem [#allocation8], %s1025
        // Predicated region
        $region57: #{tpu_custom_call.1} parent=43 // pred_check
          %p1027 = pneg %p173
        $region58: #{tpu_custom_call.1} parent=43 // pred_check_branch
          %1029 = sbr.rel (%p1027) target = $region60
        $region59: #{tpu_custom_call.1} parent=43 // pred_region
          %s1031 = ssub.s32 4096, 4096
          %1032 = vsyncadd %s1023, %s1031
          %s1033 = smul.addr %s24, 32
          %s1034 = smul.addr %s1033, 128
          %s1035 = scalar_lea.hbm %s6, %s1034
          %s1036 = sshll.u32 %s1026, 4
          %s1037 = int_to_ptr.vmem [resolvable:$true] %s1036
          %1042 = dma.vmem_to_hbm [thread:$0]  %s1037, 4096, %s1035, %s1023, 128, 128, 8
        $region60: #{tpu_custom_call.1} parent=43 // pred_fallthru
          _
      $region44: #{tpu_custom_call.1} parent=5 // pred_fallthru
        _
      %p1043 = scmp.le.s32.totalorder 2, %s19
      // Predicated region
      $region61: #{tpu_custom_call.1} parent=5 // pred_check
        %p1044 = pneg %p1043
      $region62: #{tpu_custom_call.1} parent=5 // pred_check_branch
        %1046 = sbr.rel (%p1044) target = $region64
      $region63: #{tpu_custom_call.1} parent=5 // pred_region
        %s1047 = ssub.s32 %s19, 2
        // Predicated region
        $region65: #{tpu_custom_call.1} parent=63 // pred_check
          %p1048 = pneg %p179
        $region66: #{tpu_custom_call.1} parent=63 // pred_check_branch
          %1050 = sbr.rel (%p1048) target = $region68
        $region67: #{tpu_custom_call.1} parent=63 // pred_region
          %s1051 = sand.u32 %s164, 1
          %s1052 = scalar_lea.sflag [#allocation4], %s1051
          %s1053 = sand.u32 %s164, 1
          %s1054 = smul.addr %s1053, 256
          %s1055 = scalar_lea.vmem [#allocation8], %s1054
          %1056 = dma.done %s1052, 4096
        $region68: #{tpu_custom_call.1} parent=63 // pred_fallthru
          _
      $region64: #{tpu_custom_call.1} parent=5 // pred_fallthru
        _
    $region6: #{tpu_custom_call.1} parent=1 // loop_footer
      %s23 = sadd.s32 1, %s19
    $region7: #{tpu_custom_call.1} parent=1 // loop_footer_branch
      %18 = sbr.rel target = $region3
    $region8: #{tpu_custom_call.1} parent=1 // loop_exit
      _
    %1057 = vsyncpa [#allocation3], 1
    %s1058 = scalar_lea.sflag [#allocation3], 1
    %1059 = vsyncpa %s1058, 1
    %1060 = vsyncpa [#allocation6], 1
    %1061 = vsyncpa [#allocation4], 1
    %s1062 = scalar_lea.sflag [#allocation4], 1
    %1063 = vsyncpa %s1062, 1

</llo_original>
